<compile_context>
chip_gen: v7x
topology: tpu7x:2x2x1
jax: 0.10.0
libtpu: 0.0.40
codegen_flags: <defaults>
</compile_context>

<pallas_src>
import math

import jax
import jax.numpy as jnp
from jax.experimental import pallas as pl
from jax.experimental.pallas import tpu as pltpu


_LN_EPS = 1e-5          # nn.LayerNorm(512) default eps
_BERT_LN_EPS = 1e-12    # SimpleClassifier layer_norm_eps
_OUT_PAD = 128          # lane-dense logits (out_dim=2 would force masked stores)


def _round_up(x, m):
    return (x + m - 1) // m * m


def _erf(x):
    # Abramowitz & Stegun 7.1.26 rational approximation, |err| < 1.5e-7.
    # (lax.erf has no guaranteed Mosaic lowering; this only needs exp/abs/where.)
    a1, a2, a3, a4, a5 = (0.254829592, -0.284496736, 1.421413741,
                          -1.453152027, 1.061405429)
    p = 0.3275911
    s = jnp.where(x < 0.0, -1.0, 1.0)
    ax = jnp.abs(x)
    t = 1.0 / (1.0 + p * ax)
    poly = ((((a5 * t + a4) * t + a3) * t + a2) * t + a1) * t
    return s * (1.0 - poly * jnp.exp(-ax * ax))


def _gelu(x):
    # torch-style exact gelu: x * 0.5 * (1 + erf(x / sqrt(2)))
    return x * 0.5 * (1.0 + _erf(x * (1.0 / math.sqrt(2.0))))


def _layernorm(x, w, b, eps):
    mu = jnp.mean(x, axis=-1, keepdims=True)
    xc = x - mu
    var = jnp.mean(xc * xc, axis=-1, keepdims=True)
    return xc * jax.lax.rsqrt(var + eps) * w + b


def _vqa_xml_clip_kernel(txt_ref, img_ref, ln_w_ref, ln_b_ref,
                         w1t_ref, w1i_ref, b1_ref,
                         g_ref, beta_ref, w2_ref, b2_ref, out_ref):
    txt = txt_ref[...]                                   # [tb, D]
    img = img_ref[...]                                   # [tb, D]
    ln_w = ln_w_ref[...]                                 # [1, D]
    ln_b = ln_b_ref[...]                                 # [1, D]

    # Shared outer LayerNorm(512) on both modalities.
    t = _layernorm(txt, ln_w, ln_b, _LN_EPS)
    i = _layernorm(img, ln_w, ln_b, _LN_EPS)

    # cat((t, i), dim=1) @ W1^T  ==  t @ W1[:, :D]^T + i @ W1[:, D:]^T
    # (weights already pre-transposed to (K, N) in the wrapper)
    h = (jnp.dot(t, w1t_ref[...], preferred_element_type=jnp.float32)
         + jnp.dot(i, w1i_ref[...], preferred_element_type=jnp.float32)
         + b1_ref[...])                                  # [tb, H]

    h = _gelu(h)                                         # erf-based GeLU
    h = _layernorm(h, g_ref[...], beta_ref[...], _BERT_LN_EPS)

    # Final Linear -> lane-padded logits (padded columns of W2/b2 are zero).
    out = jnp.dot(h, w2_ref[...], preferred_element_type=jnp.float32) + b2_ref[...]
    out_ref[...] = out.astype(out_ref.dtype)             # [tb, _OUT_PAD]


def vqa_xml_clip_forward(text_features, image_feature,
                         ln_w, ln_b, w1, b1, bln_w, bln_b, w2, b2,
                         *, max_tile_b=1024):
    """text_features/image_feature: [B, D] CLIP embeddings.
    ln_w/ln_b: [D] shared LayerNorm params.
    w1: [H, 2*D], b1: [H]      (classifier Linear #1, PyTorch layout)
    bln_w/bln_b: [H]           (BertLayerNorm)
    w2: [out_dim, H], b2: [out_dim] (classifier Linear #2, PyTorch layout)
    """
    B, D = text_features.shape
    H = w1.shape[0]
    out_dim = w2.shape[0]
    assert w1.shape[1] == 2 * D and w2.shape[1] == H

    # --- one-time weight plumbing in the wrapper (XLA, outside the kernel) ---
    w1_t = jnp.transpose(w1)                  # [2D, H]  (K, N) layout for MXU
    w1_text = w1_t[:D]                        # pairs with text (cat order)
    w1_image = w1_t[D:]                       # pairs with image
    w2_t = jnp.transpose(w2)                  # [H, out_dim]
    w2_p = jnp.zeros((H, _OUT_PAD), w2.dtype).at[:, :out_dim].set(w2_t)
    b2_p = jnp.zeros((1, _OUT_PAD), b2.dtype).at[0, :out_dim].set(b2)

    ln_w2 = ln_w.reshape(1, D)
    ln_b2 = ln_b.reshape(1, D)
    b1_2 = b1.reshape(1, H)
    g2 = bln_w.reshape(1, H)
    beta2 = bln_b.reshape(1, H)

    # --- batch tiling ---------------------------------------------------------
    # Biggest tile that fits comfortably in VMEM (double-buffered inputs:
    # 2 arrays * 2 bufs * tile_b * D * 4B).  Small batches collapse to a single
    # grid step; large batches keep >= 2 parallel steps for v7x megacore.
    tile_b = min(max_tile_b, _round_up(B, 8))
    n_steps = pl.cdiv(B, tile_b)
    if n_steps == 1 and B > 256:
        tile_b = _round_up(pl.cdiv(B, 2), 8)
        n_steps = pl.cdiv(B, tile_b)
    Bp = n_steps * tile_b
    if Bp != B:
        pad = Bp - B
        text_features = jnp.pad(text_features, ((0, pad), (0, 0)))
        image_feature = jnp.pad(image_feature, ((0, pad), (0, 0)))

    const = lambda i: (0, 0)   # weights/biases resident in VMEM across the grid

    out = pl.pallas_call(
        _vqa_xml_clip_kernel,
        out_shape=jax.ShapeDtypeStruct((Bp, _OUT_PAD), jnp.float32),
        grid_spec=pltpu.PrefetchScalarGridSpec(
            num_scalar_prefetch=0,
            grid=(n_steps,),
            in_specs=[
                pl.BlockSpec((tile_b, D), lambda i: (i, 0)),   # text features
                pl.BlockSpec((tile_b, D), lambda i: (i, 0)),   # image features
                pl.BlockSpec((1, D), const),                   # LayerNorm weight
                pl.BlockSpec((1, D), const),                   # LayerNorm bias
                pl.BlockSpec((D, H), const),                   # W1 (text half)
                pl.BlockSpec((D, H), const),                   # W1 (image half)
                pl.BlockSpec((1, H), const),                   # b1
                pl.BlockSpec((1, H), const),                   # BertLN gamma
                pl.BlockSpec((1, H), const),                   # BertLN beta
                pl.BlockSpec((H, _OUT_PAD), const),            # W2 (lane padded)
                pl.BlockSpec((1, _OUT_PAD), const),            # b2 (lane padded)
            ],
            out_specs=pl.BlockSpec((tile_b, _OUT_PAD), lambda i: (i, 0)),
        ),
        compiler_params=pltpu.CompilerParams(
            dimension_semantics=("parallel",),
            vmem_limit_bytes=48 * 1024 * 1024,
        ),
    )(text_features, image_feature, ln_w2, ln_b2,
      w1_text, w1_image, b1_2, g2, beta2, w2_p, b2_p)

    return out[:B, :out_dim]


def reference_forward(text_features, image_feature,
                      ln_w, ln_b, w1, b1, bln_w, bln_b, w2, b2):
    def ln(x, w, b, eps):
        mu = jnp.mean(x, axis=-1, keepdims=True)
        var = jnp.mean((x - mu) ** 2, axis=-1, keepdims=True)
        return (x - mu) / jnp.sqrt(var + eps) * w + b

    hi = jax.lax.Precision.HIGHEST
    t = ln(text_features, ln_w, ln_b, _LN_EPS)
    i = ln(image_feature, ln_w, ln_b, _LN_EPS)
    x = jnp.concatenate([t, i], axis=1)
    h = jnp.dot(x, w1.T, precision=hi) + b1
    h = h * 0.5 * (1.0 + jax.lax.erf(h / jnp.sqrt(2.0)))   # exact erf gelu
    h = ln(h, bln_w, bln_b, _BERT_LN_EPS)
    return jnp.dot(h, w2.T, precision=hi) + b2


if __name__ == "__main__":
    key = jax.random.PRNGKey(0)
    keys = jax.random.split(key, 8)

    B = 16
    D = 512                 # embedding_dim hard-coded in the module
    in_dim = 2 * D
    hid = 128
    out_dim = 2

    # "clipModel" outputs (synthetic embeddings).
    text_features = jax.random.normal(keys[0], (B, D), jnp.float32)
    image_feature = jax.random.normal(keys[1], (B, D), jnp.float32)

    # Outer nn.LayerNorm(512) params (randomized to exercise the path).
    ln_w = 1.0 + 0.1 * jax.random.normal(keys[2], (D,), jnp.float32)
    ln_b = 0.1 * jax.random.normal(keys[3], (D,), jnp.float32)

    # SimpleClassifier: Linear(in_dim, hid) Xavier-uniform, bias zero.
    lim1 = math.sqrt(6.0 / (in_dim + hid))
    w1 = jax.random.uniform(keys[4], (hid, in_dim), jnp.float32, -lim1, lim1)
    b1 = jnp.zeros((hid,), jnp.float32)

    # BertLayerNorm(hid) (randomized slightly around ones/zeros init).
    bln_w = 1.0 + 0.1 * jax.random.normal(keys[5], (hid,), jnp.float32)
    bln_b = 0.1 * jax.random.normal(keys[6], (hid,), jnp.float32)

    # Linear(hid, out_dim) Xavier-uniform, bias zero.
    lim2 = math.sqrt(6.0 / (hid + out_dim))
    w2 = jax.random.uniform(keys[7], (out_dim, hid), jnp.float32, -lim2, lim2)
    b2 = jnp.zeros((out_dim,), jnp.float32)

    out = vqa_xml_clip_forward(text_features, image_feature,
                               ln_w, ln_b, w1, b1, bln_w, bln_b, w2, b2)
    out = jax.block_until_ready(out)

    ref = reference_forward(text_features, image_feature,
                            ln_w, ln_b, w1, b1, bln_w, bln_b, w2, b2)

    assert out.shape == (B, out_dim), out.shape
    assert jnp.allclose(out, ref, atol=2e-4, rtol=2e-4), (
        f"mismatch vs reference: max abs err={jnp.max(jnp.abs(out - ref))}")

    print("KERNEL_OK")
</pallas_src>

<mosaic_0001>
module attributes {stable_mosaic.version = 11 : i64} {
  func.func @_vqa_xml_clip_kernel(%arg0: i32, %arg1: memref<16x512xf32, #tpu.memory_space<vmem>>, %arg2: memref<16x512xf32, #tpu.memory_space<vmem>>, %arg3: memref<1x512xf32, #tpu.memory_space<vmem>>, %arg4: memref<1x512xf32, #tpu.memory_space<vmem>>, %arg5: memref<512x128xf32, #tpu.memory_space<vmem>>, %arg6: memref<512x128xf32, #tpu.memory_space<vmem>>, %arg7: memref<1x128xf32, #tpu.memory_space<vmem>>, %arg8: memref<1x128xf32, #tpu.memory_space<vmem>>, %arg9: memref<1x128xf32, #tpu.memory_space<vmem>>, %arg10: memref<128x128xf32, #tpu.memory_space<vmem>>, %arg11: memref<1x128xf32, #tpu.memory_space<vmem>>, %arg12: memref<16x128xf32, #tpu.memory_space<vmem>>) attributes {dimension_semantics = [#tpu.dimension_semantics<parallel>], iteration_bounds = array<i64: 1>, scalar_prefetch = 0 : i64, scratch_operands = 0 : i64, tpu.core_type = #tpu.core_type<tc>, window_params = [{transform_indices = @transform_0, window_bounds = array<i64: 16, 512>}, {transform_indices = @transform_1, window_bounds = array<i64: 16, 512>}, {pipeline_mode = #tpu.pipeline_mode<synchronous>, transform_indices = @transform_2, window_bounds = array<i64: 1, 512>}, {pipeline_mode = #tpu.pipeline_mode<synchronous>, transform_indices = @transform_3, window_bounds = array<i64: 1, 512>}, {pipeline_mode = #tpu.pipeline_mode<synchronous>, transform_indices = @transform_4, window_bounds = array<i64: 512, 128>}, {pipeline_mode = #tpu.pipeline_mode<synchronous>, transform_indices = @transform_5, window_bounds = array<i64: 512, 128>}, {pipeline_mode = #tpu.pipeline_mode<synchronous>, transform_indices = @transform_6, window_bounds = array<i64: 1, 128>}, {pipeline_mode = #tpu.pipeline_mode<synchronous>, transform_indices = @transform_7, window_bounds = array<i64: 1, 128>}, {pipeline_mode = #tpu.pipeline_mode<synchronous>, transform_indices = @transform_8, window_bounds = array<i64: 1, 128>}, {pipeline_mode = #tpu.pipeline_mode<synchronous>, transform_indices = @transform_9, window_bounds = array<i64: 128, 128>}, {pipeline_mode = #tpu.pipeline_mode<synchronous>, transform_indices = @transform_10, window_bounds = array<i64: 1, 128>}, {transform_indices = @transform_11, window_bounds = array<i64: 16, 128>}]} {
    %c0 = arith.constant 0 : index
    %c0_0 = arith.constant 0 : index
    %0 = vector.load %arg1[%c0, %c0_0] : memref<16x512xf32, #tpu.memory_space<vmem>>, vector<16x512xf32>
    %c0_1 = arith.constant 0 : index
    %c0_2 = arith.constant 0 : index
    %1 = vector.load %arg2[%c0_1, %c0_2] : memref<16x512xf32, #tpu.memory_space<vmem>>, vector<16x512xf32>
    %c0_3 = arith.constant 0 : index
    %c0_4 = arith.constant 0 : index
    %2 = vector.load %arg3[%c0_3, %c0_4] : memref<1x512xf32, #tpu.memory_space<vmem>>, vector<1x512xf32>
    %c0_5 = arith.constant 0 : index
    %c0_6 = arith.constant 0 : index
    %3 = vector.load %arg4[%c0_5, %c0_6] : memref<1x512xf32, #tpu.memory_space<vmem>>, vector<1x512xf32>
    %cst = arith.constant dense<0.000000e+00> : vector<16xf32>
    %4 = vector.multi_reduction <add>, %0, %cst [1] : vector<16x512xf32> to vector<16xf32>
    %5 = vector.shape_cast %4 : vector<16xf32> to vector<16x1xf32>
    %cst_7 = arith.constant 5.120000e+02 : f32
    %6 = vector.broadcast %cst_7 : f32 to vector<16x1xf32>
    %7 = arith.divf %5, %6 : vector<16x1xf32>
    %8 = vector.broadcast %7 : vector<16x1xf32> to vector<16x512xf32>
    %9 = arith.subf %0, %8 : vector<16x512xf32>
    %10 = arith.mulf %9, %9 : vector<16x512xf32>
    %cst_8 = arith.constant dense<0.000000e+00> : vector<16xf32>
    %11 = vector.multi_reduction <add>, %10, %cst_8 [1] : vector<16x512xf32> to vector<16xf32>
    %12 = vector.shape_cast %11 : vector<16xf32> to vector<16x1xf32>
    %cst_9 = arith.constant 5.120000e+02 : f32
    %13 = vector.broadcast %cst_9 : f32 to vector<16x1xf32>
    %14 = arith.divf %12, %13 : vector<16x1xf32>
    %cst_10 = arith.constant 9.99999974E-6 : f32
    %15 = vector.broadcast %cst_10 : f32 to vector<16x1xf32>
    %16 = arith.addf %14, %15 : vector<16x1xf32>
    %17 = math.rsqrt %16 : vector<16x1xf32>
    %18 = vector.broadcast %17 : vector<16x1xf32> to vector<16x512xf32>
    %19 = arith.mulf %9, %18 : vector<16x512xf32>
    %20 = vector.broadcast %2 : vector<1x512xf32> to vector<16x512xf32>
    %21 = arith.mulf %19, %20 : vector<16x512xf32>
    %22 = vector.broadcast %3 : vector<1x512xf32> to vector<16x512xf32>
    %23 = arith.addf %21, %22 : vector<16x512xf32>
    %cst_11 = arith.constant dense<0.000000e+00> : vector<16xf32>
    %24 = vector.multi_reduction <add>, %1, %cst_11 [1] : vector<16x512xf32> to vector<16xf32>
    %25 = vector.shape_cast %24 : vector<16xf32> to vector<16x1xf32>
    %cst_12 = arith.constant 5.120000e+02 : f32
    %26 = vector.broadcast %cst_12 : f32 to vector<16x1xf32>
    %27 = arith.divf %25, %26 : vector<16x1xf32>
    %28 = vector.broadcast %27 : vector<16x1xf32> to vector<16x512xf32>
    %29 = arith.subf %1, %28 : vector<16x512xf32>
    %30 = arith.mulf %29, %29 : vector<16x512xf32>
    %cst_13 = arith.constant dense<0.000000e+00> : vector<16xf32>
    %31 = vector.multi_reduction <add>, %30, %cst_13 [1] : vector<16x512xf32> to vector<16xf32>
    %32 = vector.shape_cast %31 : vector<16xf32> to vector<16x1xf32>
    %cst_14 = arith.constant 5.120000e+02 : f32
    %33 = vector.broadcast %cst_14 : f32 to vector<16x1xf32>
    %34 = arith.divf %32, %33 : vector<16x1xf32>
    %cst_15 = arith.constant 9.99999974E-6 : f32
    %35 = vector.broadcast %cst_15 : f32 to vector<16x1xf32>
    %36 = arith.addf %34, %35 : vector<16x1xf32>
    %37 = math.rsqrt %36 : vector<16x1xf32>
    %38 = vector.broadcast %37 : vector<16x1xf32> to vector<16x512xf32>
    %39 = arith.mulf %29, %38 : vector<16x512xf32>
    %40 = vector.broadcast %2 : vector<1x512xf32> to vector<16x512xf32>
    %41 = arith.mulf %39, %40 : vector<16x512xf32>
    %42 = vector.broadcast %3 : vector<1x512xf32> to vector<16x512xf32>
    %43 = arith.addf %41, %42 : vector<16x512xf32>
    %c0_16 = arith.constant 0 : index
    %c0_17 = arith.constant 0 : index
    %44 = vector.load %arg5[%c0_16, %c0_17] : memref<512x128xf32, #tpu.memory_space<vmem>>, vector<512x128xf32>
    %cst_18 = arith.constant dense<0.000000e+00> : vector<16x128xf32>
    %45 = tpu.matmul %23, %44, %cst_18 {dimension_numbers = #tpu.dot_dimension_numbers<[1], [0], [0], [1], [0, 0, 1, 1], [], []>} : vector<16x512xf32>, vector<512x128xf32>, vector<16x128xf32> -> vector<16x128xf32>
    %c0_19 = arith.constant 0 : index
    %c0_20 = arith.constant 0 : index
    %46 = vector.load %arg6[%c0_19, %c0_20] : memref<512x128xf32, #tpu.memory_space<vmem>>, vector<512x128xf32>
    %cst_21 = arith.constant dense<0.000000e+00> : vector<16x128xf32>
    %47 = tpu.matmul %43, %46, %cst_21 {dimension_numbers = #tpu.dot_dimension_numbers<[1], [0], [0], [1], [0, 0, 1, 1], [], []>} : vector<16x512xf32>, vector<512x128xf32>, vector<16x128xf32> -> vector<16x128xf32>
    %48 = arith.addf %45, %47 : vector<16x128xf32>
    %c0_22 = arith.constant 0 : index
    %c0_23 = arith.constant 0 : index
    %49 = vector.load %arg7[%c0_22, %c0_23] : memref<1x128xf32, #tpu.memory_space<vmem>>, vector<1x128xf32>
    %50 = vector.broadcast %49 : vector<1x128xf32> to vector<16x128xf32>
    %51 = arith.addf %48, %50 : vector<16x128xf32>
    %cst_24 = arith.constant 5.000000e-01 : f32
    %52 = vector.broadcast %cst_24 : f32 to vector<16x128xf32>
    %53 = arith.mulf %51, %52 : vector<16x128xf32>
    %cst_25 = arith.constant 0.707106769 : f32
    %54 = vector.broadcast %cst_25 : f32 to vector<16x128xf32>
    %55 = arith.mulf %51, %54 : vector<16x128xf32>
    %cst_26 = arith.constant 0.000000e+00 : f32
    %56 = vector.broadcast %cst_26 : f32 to vector<16x128xf32>
    %57 = arith.cmpf olt, %55, %56 : vector<16x128xf32>
    %cst_27 = arith.constant -1.000000e+00 : f32
    %cst_28 = arith.constant 1.000000e+00 : f32
    %58 = vector.broadcast %cst_27 : f32 to vector<16x128xf32>
    %59 = vector.broadcast %cst_28 : f32 to vector<16x128xf32>
    %60 = arith.select %57, %58, %59 : vector<16x128xi1>, vector<16x128xf32>
    %61 = math.absf %55 : vector<16x128xf32>
    %cst_29 = arith.constant 0.327591091 : f32
    %62 = vector.broadcast %cst_29 : f32 to vector<16x128xf32>
    %63 = arith.mulf %62, %61 : vector<16x128xf32>
    %cst_30 = arith.constant 1.000000e+00 : f32
    %64 = vector.broadcast %cst_30 : f32 to vector<16x128xf32>
    %65 = arith.addf %64, %63 : vector<16x128xf32>
    %cst_31 = arith.constant 1.000000e+00 : f32
    %66 = vector.broadcast %cst_31 : f32 to vector<16x128xf32>
    %67 = arith.divf %66, %65 : vector<16x128xf32>
    %cst_32 = arith.constant 1.06140542 : f32
    %68 = vector.broadcast %cst_32 : f32 to vector<16x128xf32>
    %69 = arith.mulf %68, %67 : vector<16x128xf32>
    %cst_33 = arith.constant -1.45315206 : f32
    %70 = vector.broadcast %cst_33 : f32 to vector<16x128xf32>
    %71 = arith.addf %69, %70 : vector<16x128xf32>
    %72 = arith.mulf %71, %67 : vector<16x128xf32>
    %cst_34 = arith.constant 1.42141378 : f32
    %73 = vector.broadcast %cst_34 : f32 to vector<16x128xf32>
    %74 = arith.addf %72, %73 : vector<16x128xf32>
    %75 = arith.mulf %74, %67 : vector<16x128xf32>
    %cst_35 = arith.constant -0.284496725 : f32
    %76 = vector.broadcast %cst_35 : f32 to vector<16x128xf32>
    %77 = arith.addf %75, %76 : vector<16x128xf32>
    %78 = arith.mulf %77, %67 : vector<16x128xf32>
    %cst_36 = arith.constant 0.254829586 : f32
    %79 = vector.broadcast %cst_36 : f32 to vector<16x128xf32>
    %80 = arith.addf %78, %79 : vector<16x128xf32>
    %81 = arith.mulf %80, %67 : vector<16x128xf32>
    %cst_37 = arith.constant 0.000000e+00 : f32
    %82 = vector.broadcast %cst_37 : f32 to vector<16x128xf32>
    %83 = arith.subf %82, %61 : vector<16x128xf32>
    %84 = arith.mulf %83, %61 : vector<16x128xf32>
    %85 = math.exp %84 : vector<16x128xf32>
    %86 = arith.mulf %81, %85 : vector<16x128xf32>
    %cst_38 = arith.constant 1.000000e+00 : f32
    %87 = vector.broadcast %cst_38 : f32 to vector<16x128xf32>
    %88 = arith.subf %87, %86 : vector<16x128xf32>
    %89 = arith.mulf %60, %88 : vector<16x128xf32>
    %cst_39 = arith.constant 1.000000e+00 : f32
    %90 = vector.broadcast %cst_39 : f32 to vector<16x128xf32>
    %91 = arith.addf %90, %89 : vector<16x128xf32>
    %92 = arith.mulf %53, %91 : vector<16x128xf32>
    %c0_40 = arith.constant 0 : index
    %c0_41 = arith.constant 0 : index
    %93 = vector.load %arg8[%c0_40, %c0_41] : memref<1x128xf32, #tpu.memory_space<vmem>>, vector<1x128xf32>
    %c0_42 = arith.constant 0 : index
    %c0_43 = arith.constant 0 : index
    %94 = vector.load %arg9[%c0_42, %c0_43] : memref<1x128xf32, #tpu.memory_space<vmem>>, vector<1x128xf32>
    %cst_44 = arith.constant dense<0.000000e+00> : vector<16xf32>
    %95 = vector.multi_reduction <add>, %92, %cst_44 [1] : vector<16x128xf32> to vector<16xf32>
    %96 = vector.shape_cast %95 : vector<16xf32> to vector<16x1xf32>
    %cst_45 = arith.constant 1.280000e+02 : f32
    %97 = vector.broadcast %cst_45 : f32 to vector<16x1xf32>
    %98 = arith.divf %96, %97 : vector<16x1xf32>
    %99 = vector.broadcast %98 : vector<16x1xf32> to vector<16x128xf32>
    %100 = arith.subf %92, %99 : vector<16x128xf32>
    %101 = arith.mulf %100, %100 : vector<16x128xf32>
    %cst_46 = arith.constant dense<0.000000e+00> : vector<16xf32>
    %102 = vector.multi_reduction <add>, %101, %cst_46 [1] : vector<16x128xf32> to vector<16xf32>
    %103 = vector.shape_cast %102 : vector<16xf32> to vector<16x1xf32>
    %cst_47 = arith.constant 1.280000e+02 : f32
    %104 = vector.broadcast %cst_47 : f32 to vector<16x1xf32>
    %105 = arith.divf %103, %104 : vector<16x1xf32>
    %cst_48 = arith.constant 9.99999996E-13 : f32
    %106 = vector.broadcast %cst_48 : f32 to vector<16x1xf32>
    %107 = arith.addf %105, %106 : vector<16x1xf32>
    %108 = math.rsqrt %107 : vector<16x1xf32>
    %109 = vector.broadcast %108 : vector<16x1xf32> to vector<16x128xf32>
    %110 = arith.mulf %100, %109 : vector<16x128xf32>
    %111 = vector.broadcast %93 : vector<1x128xf32> to vector<16x128xf32>
    %112 = arith.mulf %110, %111 : vector<16x128xf32>
    %113 = vector.broadcast %94 : vector<1x128xf32> to vector<16x128xf32>
    %114 = arith.addf %112, %113 : vector<16x128xf32>
    %c0_49 = arith.constant 0 : index
    %c0_50 = arith.constant 0 : index
    %115 = vector.load %arg10[%c0_49, %c0_50] : memref<128x128xf32, #tpu.memory_space<vmem>>, vector<128x128xf32>
    %cst_51 = arith.constant dense<0.000000e+00> : vector<16x128xf32>
    %116 = tpu.matmul %114, %115, %cst_51 {dimension_numbers = #tpu.dot_dimension_numbers<[1], [0], [0], [1], [0, 0, 1, 1], [], []>} : vector<16x128xf32>, vector<128x128xf32>, vector<16x128xf32> -> vector<16x128xf32>
    %c0_52 = arith.constant 0 : index
    %c0_53 = arith.constant 0 : index
    %117 = vector.load %arg11[%c0_52, %c0_53] : memref<1x128xf32, #tpu.memory_space<vmem>>, vector<1x128xf32>
    %118 = vector.broadcast %117 : vector<1x128xf32> to vector<16x128xf32>
    %119 = arith.addf %116, %118 : vector<16x128xf32>
    %c0_54 = arith.constant 0 : index
    %c0_55 = arith.constant 0 : index
    %120 = vector.load %arg12[%c0_54, %c0_55] : memref<16x128xf32, #tpu.memory_space<vmem>>, vector<16x128xf32>
    tpu.vector_store %arg12[%c0_54, %c0_55], %119 {strides = array<i32>} : memref<16x128xf32, #tpu.memory_space<vmem>>, vector<16x128xf32>,
    return
  }
  func.func @transform_0(%arg0: i32) -> (i32, i32) {
    %c0_i32 = arith.constant 0 : i32
    %c0_i32_0 = arith.constant 0 : i32
    return %arg0, %c0_i32 : i32, i32
  }
  func.func @transform_1(%arg0: i32) -> (i32, i32) {
    %c0_i32 = arith.constant 0 : i32
    %c0_i32_0 = arith.constant 0 : i32
    return %arg0, %c0_i32 : i32, i32
  }
  func.func @transform_2(%arg0: i32) -> (i32, i32) {
    %c0_i32 = arith.constant 0 : i32
    %c0_i32_0 = arith.constant 0 : i32
    %c0_i32_1 = arith.constant 0 : i32
    return %c0_i32, %c0_i32_0 : i32, i32
  }
  func.func @transform_3(%arg0: i32) -> (i32, i32) {
    %c0_i32 = arith.constant 0 : i32
    %c0_i32_0 = arith.constant 0 : i32
    %c0_i32_1 = arith.constant 0 : i32
    return %c0_i32, %c0_i32_0 : i32, i32
  }
  func.func @transform_4(%arg0: i32) -> (i32, i32) {
    %c0_i32 = arith.constant 0 : i32
    %c0_i32_0 = arith.constant 0 : i32
    %c0_i32_1 = arith.constant 0 : i32
    return %c0_i32, %c0_i32_0 : i32, i32
  }
  func.func @transform_5(%arg0: i32) -> (i32, i32) {
    %c0_i32 = arith.constant 0 : i32
    %c0_i32_0 = arith.constant 0 : i32
    %c0_i32_1 = arith.constant 0 : i32
    return %c0_i32, %c0_i32_0 : i32, i32
  }
  func.func @transform_6(%arg0: i32) -> (i32, i32) {
    %c0_i32 = arith.constant 0 : i32
    %c0_i32_0 = arith.constant 0 : i32
    %c0_i32_1 = arith.constant 0 : i32
    return %c0_i32, %c0_i32_0 : i32, i32
  }
  func.func @transform_7(%arg0: i32) -> (i32, i32) {
    %c0_i32 = arith.constant 0 : i32
    %c0_i32_0 = arith.constant 0 : i32
    %c0_i32_1 = arith.constant 0 : i32
    return %c0_i32, %c0_i32_0 : i32, i32
  }
  func.func @transform_8(%arg0: i32) -> (i32, i32) {
    %c0_i32 = arith.constant 0 : i32
    %c0_i32_0 = arith.constant 0 : i32
    %c0_i32_1 = arith.constant 0 : i32
    return %c0_i32, %c0_i32_0 : i32, i32
  }
  func.func @transform_9(%arg0: i32) -> (i32, i32) {
    %c0_i32 = arith.constant 0 : i32
    %c0_i32_0 = arith.constant 0 : i32
    %c0_i32_1 = arith.constant 0 : i32
    return %c0_i32, %c0_i32_0 : i32, i32
  }
  func.func @transform_10(%arg0: i32) -> (i32, i32) {
    %c0_i32 = arith.constant 0 : i32
    %c0_i32_0 = arith.constant 0 : i32
    %c0_i32_1 = arith.constant 0 : i32
    return %c0_i32, %c0_i32_0 : i32, i32
  }
  func.func @transform_11(%arg0: i32) -> (i32, i32) {
    %c0_i32 = arith.constant 0 : i32
    %c0_i32_0 = arith.constant 0 : i32
    return %arg0, %c0_i32 : i32, i32
  }
}

</mosaic_0001>

<llo_original>
// kernel: tpu_custom_call.1
$region0: #{tpu_custom_call.1}
  #allocation0 [shape = 'u32[]', space=smem, size = 0x4, offset = 0x4, fixed_abs, tag = 'smem constant byte address 0x4 - core index']
  #allocation1 [shape = 'u32[144,128]{1,0:T(1,128)}', space=vmem, size = 0x12000, scoped, tag = 'internal scratch']
  %s0 = inlined_call_operand.hbm [shape: f32[16,512], index: 0, kind: input, shape index: {}]
  %s1 = inlined_call_operand.hbm [shape: f32[16,512], index: 1, kind: input, shape index: {}]
  %s2 = inlined_call_operand.vmem [shape: f32[1,512], index: 2, kind: input, shape index: {}]
  %s3 = inlined_call_operand.vmem [shape: f32[1,512], index: 3, kind: input, shape index: {}]
  %s4 = inlined_call_operand.hbm [shape: f32[512,128], index: 4, kind: input, shape index: {}]
  %s5 = inlined_call_operand.hbm [shape: f32[512,128], index: 5, kind: input, shape index: {}]
  %s6 = inlined_call_operand.vmem [shape: f32[1,128], index: 6, kind: input, shape index: {}]
  %s7 = inlined_call_operand.vmem [shape: f32[1,128], index: 7, kind: input, shape index: {}]
  %s8 = inlined_call_operand.vmem [shape: f32[1,128], index: 8, kind: input, shape index: {}]
  %s9 = inlined_call_operand.hbm [shape: f32[128,128], index: 9, kind: input, shape index: {}]
  %s10 = inlined_call_operand.vmem [shape: f32[1,128], index: 10, kind: input, shape index: {}]
  %s11 = inlined_call_operand.hbm [shape: f32[16,128], index: 11, kind: output, shape index: {}]
  %s12 = sld [smem:[#allocation0]]
  $region74: #{tpu_custom_call.1} parent=0
    _
  %s14 = ssub.s32 1, %s12
  %s15 = scalar_select 0, %s14, %s12
  $region1: #{tpu_custom_call.1} parent=0
    #allocation2 [shape = 'u8[32768]{0}', space=vmem, size = 0x8000, scoped, tag = 'input window, operand 0, single buffered']
    #allocation3 [shape = 's32[1]{0}', space=sflag, size = 0x4, scoped, tag = 'scoped memory for tpu_custom_call.1']
    #allocation4 [shape = 's32[1]{0}', space=sflag, size = 0x4, scoped, tag = 'scoped memory for tpu_custom_call.1']
    #allocation5 [shape = 'u8[32768]{0}', space=vmem, size = 0x8000, scoped, tag = 'input window, operand 1, single buffered']
    #allocation6 [shape = 's32[1]{0}', space=sflag, size = 0x4, scoped, tag = 'scoped memory for tpu_custom_call.1']
    #allocation7 [shape = 'u8[262144]{0}', space=vmem, size = 0x40000, scoped, tag = 'input window, operand 4, single buffered']
    #allocation8 [shape = 'u8[262144]{0}', space=vmem, size = 0x40000, scoped, tag = 'input window, operand 5, single buffered']
    #allocation9 [shape = 's32[1]{0}', space=sflag, size = 0x4, scoped, tag = 'scoped memory for tpu_custom_call.1']
    #allocation10 [shape = 'u8[65536]{0}', space=vmem, size = 0x10000, scoped, tag = 'input window, operand 9, single buffered']
    #allocation11 [shape = 'u8[8192]{0}', space=vmem, size = 0x2000, scoped, tag = 'output window, operand 0, single buffered']
    %16 = vsyncpa [#allocation3], 0
    %17 = vsyncpa [#allocation6], 0
    %18 = vsyncpa [#allocation9], 0
    %19 = vsyncpa [#allocation4], 0
    // Predicated region
    $region2: #{tpu_custom_call.1} parent=1 // pred_check
      _
    $region3: #{tpu_custom_call.1} parent=1 // pred_check_branch
      %21 = sbr.rel (0) target = $region5
    $region4: #{tpu_custom_call.1} parent=1 // pred_region
      %s23 = ssub.s32 1024, 1024
      %24 = vsyncadd [#allocation3], %s23
      %s25 = sshll.u32 [#allocation2], 4
      %s26 = int_to_ptr.vmem [resolvable:$true] %s25
      %31 = dma.hbm_to_vmem [thread:$0]  %s0, 1024, %s26, [#allocation3], 512, 512, 32
    $region5: #{tpu_custom_call.1} parent=1 // pred_fallthru
      _
    // Predicated region
    $region6: #{tpu_custom_call.1} parent=1 // pred_check
      _
    $region7: #{tpu_custom_call.1} parent=1 // pred_check_branch
      %33 = sbr.rel (0) target = $region9
    $region8: #{tpu_custom_call.1} parent=1 // pred_region
      %s35 = ssub.s32 1024, 1024
      %36 = vsyncadd [#allocation6], %s35
      %s37 = sshll.u32 [#allocation5], 4
      %s38 = int_to_ptr.vmem [resolvable:$true] %s37
      %43 = dma.hbm_to_vmem [thread:$0]  %s1, 1024, %s38, [#allocation6], 512, 512, 32
    $region9: #{tpu_custom_call.1} parent=1 // pred_fallthru
      _
    // Predicated region
    $region10: #{tpu_custom_call.1} parent=1 // pred_check
      _
    $region11: #{tpu_custom_call.1} parent=1 // pred_check_branch
      %45 = sbr.rel (0) target = $region13
    $region12: #{tpu_custom_call.1} parent=1 // pred_region
      _
    $region13: #{tpu_custom_call.1} parent=1 // pred_fallthru
      _
    // Predicated region
    $region14: #{tpu_custom_call.1} parent=1 // pred_check
      _
    $region15: #{tpu_custom_call.1} parent=1 // pred_check_branch
      %47 = sbr.rel (0) target = $region17
    $region16: #{tpu_custom_call.1} parent=1 // pred_region
      _
    $region17: #{tpu_custom_call.1} parent=1 // pred_fallthru
      _
    // Predicated region
    $region18: #{tpu_custom_call.1} parent=1 // pred_check
      _
    $region19: #{tpu_custom_call.1} parent=1 // pred_check_branch
      %49 = sbr.rel (0) target = $region21
    $region20: #{tpu_custom_call.1} parent=1 // pred_region
      %s51 = ssub.s32 8192, 8192
      %52 = vsyncadd [#allocation6], %s51
      %s53 = sshll.u32 [#allocation7], 4
      %s54 = int_to_ptr.vmem [resolvable:$true] %s53
      %59 = dma.hbm_to_vmem [thread:$0]  %s4, 8192, %s54, [#allocation6], 128, 128, 8
    $region21: #{tpu_custom_call.1} parent=1 // pred_fallthru
      _
    // Predicated region
    $region22: #{tpu_custom_call.1} parent=1 // pred_check
      _
    $region23: #{tpu_custom_call.1} parent=1 // pred_check_branch
      %61 = sbr.rel (0) target = $region25
    $region24: #{tpu_custom_call.1} parent=1 // pred_region
      %s63 = ssub.s32 8192, 8192
      %64 = vsyncadd [#allocation9], %s63
      %s65 = sshll.u32 [#allocation8], 4
      %s66 = int_to_ptr.vmem [resolvable:$true] %s65
      %71 = dma.hbm_to_vmem [thread:$0]  %s5, 8192, %s66, [#allocation9], 128, 128, 8
    $region25: #{tpu_custom_call.1} parent=1 // pred_fallthru
      _
    // Predicated region
    $region26: #{tpu_custom_call.1} parent=1 // pred_check
      _
    $region27: #{tpu_custom_call.1} parent=1 // pred_check_branch
      %73 = sbr.rel (0) target = $region29
    $region28: #{tpu_custom_call.1} parent=1 // pred_region
      _
    $region29: #{tpu_custom_call.1} parent=1 // pred_fallthru
      _
    // Predicated region
    $region30: #{tpu_custom_call.1} parent=1 // pred_check
      _
    $region31: #{tpu_custom_call.1} parent=1 // pred_check_branch
      %75 = sbr.rel (0) target = $region33
    $region32: #{tpu_custom_call.1} parent=1 // pred_region
      _
    $region33: #{tpu_custom_call.1} parent=1 // pred_fallthru
      _
    // Predicated region
    $region34: #{tpu_custom_call.1} parent=1 // pred_check
      _
    $region35: #{tpu_custom_call.1} parent=1 // pred_check_branch
      %77 = sbr.rel (0) target = $region37
    $region36: #{tpu_custom_call.1} parent=1 // pred_region
      _
    $region37: #{tpu_custom_call.1} parent=1 // pred_fallthru
      _
    // Predicated region
    $region38: #{tpu_custom_call.1} parent=1 // pred_check
      _
    $region39: #{tpu_custom_call.1} parent=1 // pred_check_branch
      %79 = sbr.rel (0) target = $region41
    $region40: #{tpu_custom_call.1} parent=1 // pred_region
      %s81 = ssub.s32 2048, 2048
      %82 = vsyncadd [#allocation9], %s81
      %s83 = sshll.u32 [#allocation10], 4
      %s84 = int_to_ptr.vmem [resolvable:$true] %s83
      %89 = dma.hbm_to_vmem [thread:$0]  %s9, 2048, %s84, [#allocation9], 128, 128, 8
    $region41: #{tpu_custom_call.1} parent=1 // pred_fallthru
      _
    // Predicated region
    $region42: #{tpu_custom_call.1} parent=1 // pred_check
      _
    $region43: #{tpu_custom_call.1} parent=1 // pred_check_branch
      %91 = sbr.rel (0) target = $region45
    $region44: #{tpu_custom_call.1} parent=1 // pred_region
      _
    $region45: #{tpu_custom_call.1} parent=1 // pred_fallthru
      _
    // Predicated region
    $region46: #{tpu_custom_call.1} parent=1 // pred_check
      _
    $region47: #{tpu_custom_call.1} parent=1 // pred_check_branch
      %93 = sbr.rel (0) target = $region49
    $region48: #{tpu_custom_call.1} parent=1 // pred_region
      %94 = dma.done [#allocation3], 1024
    $region49: #{tpu_custom_call.1} parent=1 // pred_fallthru
      _
    // Predicated region
    $region50: #{tpu_custom_call.1} parent=1 // pred_check
      _
    $region51: #{tpu_custom_call.1} parent=1 // pred_check_branch
      %96 = sbr.rel (0) target = $region53
    $region52: #{tpu_custom_call.1} parent=1 // pred_region
      %97 = dma.done [#allocation6], 1024
    $region53: #{tpu_custom_call.1} parent=1 // pred_fallthru
      _
    // Predicated region
    $region54: #{tpu_custom_call.1} parent=1 // pred_check
      _
    $region55: #{tpu_custom_call.1} parent=1 // pred_check_branch
      %99 = sbr.rel (0) target = $region57
    $region56: #{tpu_custom_call.1} parent=1 // pred_region
      %100 = dma.done [#allocation6], 8192
    $region57: #{tpu_custom_call.1} parent=1 // pred_fallthru
      _
    // Predicated region
    $region58: #{tpu_custom_call.1} parent=1 // pred_check
      _
    $region59: #{tpu_custom_call.1} parent=1 // pred_check_branch
      %102 = sbr.rel (0) target = $region61
    $region60: #{tpu_custom_call.1} parent=1 // pred_region
      %103 = dma.done [#allocation9], 8192
    $region61: #{tpu_custom_call.1} parent=1 // pred_fallthru
      _
    // Predicated region
    $region62: #{tpu_custom_call.1} parent=1 // pred_check
      _
    $region63: #{tpu_custom_call.1} parent=1 // pred_check_branch
      %105 = sbr.rel (0) target = $region65
    $region64: #{tpu_custom_call.1} parent=1 // pred_region
      %106 = dma.done [#allocation9], 2048
    $region65: #{tpu_custom_call.1} parent=1 // pred_fallthru
      _
    %v107 = vld [vmem:[#allocation2] sm:$0xff]
    %v108 = vld [vmem:[#allocation2 + $0x8] sm:$0xff]
    %v109 = vld [vmem:[#allocation2 + $0x10] sm:$0xff]
    %v110 = vld [vmem:[#allocation2 + $0x18] sm:$0xff]
    %v111 = vld [vmem:[#allocation2 + $0x20] sm:$0xff]
    %v112 = vld [vmem:[#allocation2 + $0x28] sm:$0xff]
    %v113 = vld [vmem:[#allocation2 + $0x30] sm:$0xff]
    %v114 = vld [vmem:[#allocation2 + $0x38] sm:$0xff]
    %v115 = vld [vmem:[#allocation5] sm:$0xff]
    %v116 = vld [vmem:[#allocation5 + $0x8] sm:$0xff]
    %v117 = vld [vmem:[#allocation5 + $0x10] sm:$0xff]
    %v118 = vld [vmem:[#allocation5 + $0x18] sm:$0xff]
    %v119 = vld [vmem:[#allocation5 + $0x20] sm:$0xff]
    %v120 = vld [vmem:[#allocation5 + $0x28] sm:$0xff]
    %v121 = vld [vmem:[#allocation5 + $0x30] sm:$0xff]
    %v122 = vld [vmem:[#allocation5 + $0x38] sm:$0xff]
    %v123 = vld [vmem:[%s2] sm:$0xf]
    %v124 = vld [vmem:[%s3] sm:$0xf]
    %v125 = vadd.f32 %v107, %v108
    %v126 = vadd.f32 %v125, %v109
    %v127 = vadd.f32 %v126, %v110
    %128 = vadd.xlane.f32.xlu0 %v127
    %v129 = vpop.xlane.xlu0 %128
    %v130 = vadd.f32 %v111, %v112
    %v131 = vadd.f32 %v130, %v113
    %v132 = vadd.f32 %v131, %v114
    %133 = vadd.xlane.f32.xlu0 %v132
    %v134 = vpop.xlane.xlu0 %133
    %v135 = vrcp.pop 512.0
    %v136 = vmul.f32 %v129, %v135
    %v137 = vmul.f32 %v134, %v135
    %v138 = vsub.f32 %v107, %v136
    %v139 = vsub.f32 %v108, %v136
    %v140 = vsub.f32 %v109, %v136
    %v141 = vsub.f32 %v110, %v136
    %v142 = vsub.f32 %v111, %v137
    %v143 = vsub.f32 %v112, %v137
    %v144 = vsub.f32 %v113, %v137
    %v145 = vsub.f32 %v114, %v137
    %v146 = vmul.f32 %v138, %v138
    %v147 = vmul.f32 %v139, %v139
    %v148 = vmul.f32 %v140, %v140
    %v149 = vmul.f32 %v141, %v141
    %v150 = vmul.f32 %v142, %v142
    %v151 = vmul.f32 %v143, %v143
    %v152 = vmul.f32 %v144, %v144
    %v153 = vmul.f32 %v145, %v145
    %v154 = vadd.f32 %v146, %v147
    %v155 = vadd.f32 %v154, %v148
    %v156 = vadd.f32 %v155, %v149
    %157 = vadd.xlane.f32.xlu0 %v156
    %v158 = vpop.xlane.xlu0 %157
    %v159 = vadd.f32 %v150, %v151
    %v160 = vadd.f32 %v159, %v152
    %v161 = vadd.f32 %v160, %v153
    %162 = vadd.xlane.f32.xlu0 %v161
    %v163 = vpop.xlane.xlu0 %162
    %v164 = vmul.f32 %v158, %v135
    %v165 = vmul.f32 %v163, %v135
    %v166 = vadd.f32 %v164, 1e-05
    %v167 = vadd.f32 %v165, 1e-05
    %v168 = vrsqrt.pop %v166
    %v169 = vrsqrt.pop %v167
    %v170 = vmul.f32 %v138, %v168
    %v171 = vmul.f32 %v139, %v168
    %v172 = vmul.f32 %v140, %v168
    %v173 = vmul.f32 %v141, %v168
    %v174 = vmul.f32 %v142, %v169
    %v175 = vmul.f32 %v143, %v169
    %v176 = vmul.f32 %v144, %v169
    %v177 = vmul.f32 %v145, %v169
    %v179 = vlaneseq
    %v180 = vshrl.u32 %v179, 7
    %v181 = vsub.s32 0, %v180
    %v182 = vrot.slane %v123, %v181
    %v183 = vlaneseq
    %v184 = vshrl.u32 %v183, 7
    %v185 = vsub.s32 1, %v184
    %v186 = vrot.slane %v123, %v185
    %v187 = vlaneseq
    %v188 = vshrl.u32 %v187, 7
    %v189 = vsub.s32 2, %v188
    %v190 = vrot.slane %v123, %v189
    %v191 = vlaneseq
    %v192 = vshrl.u32 %v191, 7
    %v193 = vsub.s32 3, %v192
    %v194 = vrot.slane %v123, %v193
    %v199 = vmul.f32 %v170, %v182
    %v200 = vmul.f32 %v171, %v186
    %v201 = vmul.f32 %v172, %v190
    %v202 = vmul.f32 %v173, %v194
    %v203 = vmul.f32 %v174, %v182
    %v204 = vmul.f32 %v175, %v186
    %v205 = vmul.f32 %v176, %v190
    %v206 = vmul.f32 %v177, %v194
    %v208 = vlaneseq
    %v209 = vshrl.u32 %v208, 7
    %v210 = vsub.s32 0, %v209
    %v211 = vrot.slane %v124, %v210
    %v212 = vlaneseq
    %v213 = vshrl.u32 %v212, 7
    %v214 = vsub.s32 1, %v213
    %v215 = vrot.slane %v124, %v214
    %v216 = vlaneseq
    %v217 = vshrl.u32 %v216, 7
    %v218 = vsub.s32 2, %v217
    %v219 = vrot.slane %v124, %v218
    %v220 = vlaneseq
    %v221 = vshrl.u32 %v220, 7
    %v222 = vsub.s32 3, %v221
    %v223 = vrot.slane %v124, %v222
    %v228 = vadd.f32 %v199, %v211
    %v229 = vadd.f32 %v200, %v215
    %v230 = vadd.f32 %v201, %v219
    %v231 = vadd.f32 %v202, %v223
    %v232 = vadd.f32 %v203, %v211
    %v233 = vadd.f32 %v204, %v215
    %v234 = vadd.f32 %v205, %v219
    %v235 = vadd.f32 %v206, %v223
    %v236 = vadd.f32 %v115, %v116
    %v237 = vadd.f32 %v236, %v117
    %v238 = vadd.f32 %v237, %v118
    %239 = vadd.xlane.f32.xlu0 %v238
    %v240 = vpop.xlane.xlu0 %239
    %v241 = vadd.f32 %v119, %v120
    %v242 = vadd.f32 %v241, %v121
    %v243 = vadd.f32 %v242, %v122
    %244 = vadd.xlane.f32.xlu0 %v243
    %v245 = vpop.xlane.xlu0 %244
    %v246 = vmul.f32 %v240, %v135
    %v247 = vmul.f32 %v245, %v135
    %v248 = vsub.f32 %v115, %v246
    %v249 = vsub.f32 %v116, %v246
    %v250 = vsub.f32 %v117, %v246
    %v251 = vsub.f32 %v118, %v246
    %v252 = vsub.f32 %v119, %v247
    %v253 = vsub.f32 %v120, %v247
    %v254 = vsub.f32 %v121, %v247
    %v255 = vsub.f32 %v122, %v247
    %v256 = vmul.f32 %v248, %v248
    %v257 = vmul.f32 %v249, %v249
    %v258 = vmul.f32 %v250, %v250
    %v259 = vmul.f32 %v251, %v251
    %v260 = vmul.f32 %v252, %v252
    %v261 = vmul.f32 %v253, %v253
    %v262 = vmul.f32 %v254, %v254
    %v263 = vmul.f32 %v255, %v255
    %v264 = vadd.f32 %v256, %v257
    %v265 = vadd.f32 %v264, %v258
    %v266 = vadd.f32 %v265, %v259
    %267 = vadd.xlane.f32.xlu0 %v266
    %v268 = vpop.xlane.xlu0 %267
    %v269 = vadd.f32 %v260, %v261
    %v270 = vadd.f32 %v269, %v262
    %v271 = vadd.f32 %v270, %v263
    %272 = vadd.xlane.f32.xlu0 %v271
    %v273 = vpop.xlane.xlu0 %272
    %v274 = vmul.f32 %v268, %v135
    %v275 = vmul.f32 %v273, %v135
    %v276 = vadd.f32 %v274, 1e-05
    %v277 = vadd.f32 %v275, 1e-05
    %v278 = vrsqrt.pop %v276
    %v279 = vrsqrt.pop %v277
    %v280 = vmul.f32 %v248, %v278
    %v281 = vmul.f32 %v249, %v278
    %v282 = vmul.f32 %v250, %v278
    %v283 = vmul.f32 %v251, %v278
    %v284 = vmul.f32 %v252, %v279
    %v285 = vmul.f32 %v253, %v279
    %v286 = vmul.f32 %v254, %v279
    %v287 = vmul.f32 %v255, %v279
    %v288 = vmul.f32 %v280, %v182
    %v289 = vmul.f32 %v281, %v186
    %v290 = vmul.f32 %v282, %v190
    %v291 = vmul.f32 %v283, %v194
    %v292 = vmul.f32 %v284, %v182
    %v293 = vmul.f32 %v285, %v186
    %v294 = vmul.f32 %v286, %v190
    %v295 = vmul.f32 %v287, %v194
    %v296 = vadd.f32 %v288, %v211
    %v297 = vadd.f32 %v289, %v215
    %v298 = vadd.f32 %v290, %v219
    %v299 = vadd.f32 %v291, %v223
    %v300 = vadd.f32 %v292, %v211
    %v301 = vadd.f32 %v293, %v215
    %v302 = vadd.f32 %v294, %v219
    %v303 = vadd.f32 %v295, %v223
    %v304 = vld [vmem:[#allocation7] sm:$0xff]
    %v305 = vld [vmem:[#allocation7 + $0x8] sm:$0xff]
    %v306 = vld [vmem:[#allocation7 + $0x10] sm:$0xff]
    %v307 = vld [vmem:[#allocation7 + $0x18] sm:$0xff]
    %v308 = vld [vmem:[#allocation7 + $0x20] sm:$0xff]
    %v309 = vld [vmem:[#allocation7 + $0x28] sm:$0xff]
    %v310 = vld [vmem:[#allocation7 + $0x30] sm:$0xff]
    %v311 = vld [vmem:[#allocation7 + $0x38] sm:$0xff]
    %v312 = vld [vmem:[#allocation7 + $0x40] sm:$0xff]
    %v313 = vld [vmem:[#allocation7 + $0x48] sm:$0xff]
    %v314 = vld [vmem:[#allocation7 + $0x50] sm:$0xff]
    %v315 = vld [vmem:[#allocation7 + $0x58] sm:$0xff]
    %v316 = vld [vmem:[#allocation7 + $0x60] sm:$0xff]
    %v317 = vld [vmem:[#allocation7 + $0x68] sm:$0xff]
    %v318 = vld [vmem:[#allocation7 + $0x70] sm:$0xff]
    %v319 = vld [vmem:[#allocation7 + $0x78] sm:$0xff]
    %v320 = vld [vmem:[#allocation7 + $0x80] sm:$0xff]
    %v321 = vld [vmem:[#allocation7 + $0x88] sm:$0xff]
    %v322 = vld [vmem:[#allocation7 + $0x90] sm:$0xff]
    %v323 = vld [vmem:[#allocation7 + $0x98] sm:$0xff]
    %v324 = vld [vmem:[#allocation7 + $0xa0] sm:$0xff]
    %v325 = vld [vmem:[#allocation7 + $0xa8] sm:$0xff]
    %v326 = vld [vmem:[#allocation7 + $0xb0] sm:$0xff]
    %v327 = vld [vmem:[#allocation7 + $0xb8] sm:$0xff]
    %v328 = vld [vmem:[#allocation7 + $0xc0] sm:$0xff]
    %v329 = vld [vmem:[#allocation7 + $0xc8] sm:$0xff]
    %v330 = vld [vmem:[#allocation7 + $0xd0] sm:$0xff]
    %v331 = vld [vmem:[#allocation7 + $0xd8] sm:$0xff]
    %v332 = vld [vmem:[#allocation7 + $0xe0] sm:$0xff]
    %v333 = vld [vmem:[#allocation7 + $0xe8] sm:$0xff]
    %v334 = vld [vmem:[#allocation7 + $0xf0] sm:$0xff]
    %v335 = vld [vmem:[#allocation7 + $0xf8] sm:$0xff]
    %v336 = vld [vmem:[#allocation7 + $0x100] sm:$0xff]
    %v337 = vld [vmem:[#allocation7 + $0x108] sm:$0xff]
    %v338 = vld [vmem:[#allocation7 + $0x110] sm:$0xff]
    %v339 = vld [vmem:[#allocation7 + $0x118] sm:$0xff]
    %v340 = vld [vmem:[#allocation7 + $0x120] sm:$0xff]
    %v341 = vld [vmem:[#allocation7 + $0x128] sm:$0xff]
    %v342 = vld [vmem:[#allocation7 + $0x130] sm:$0xff]
    %v343 = vld [vmem:[#allocation7 + $0x138] sm:$0xff]
    %v344 = vld [vmem:[#allocation7 + $0x140] sm:$0xff]
    %v345 = vld [vmem:[#allocation7 + $0x148] sm:$0xff]
    %v346 = vld [vmem:[#allocation7 + $0x150] sm:$0xff]
    %v347 = vld [vmem:[#allocation7 + $0x158] sm:$0xff]
    %v348 = vld [vmem:[#allocation7 + $0x160] sm:$0xff]
    %v349 = vld [vmem:[#allocation7 + $0x168] sm:$0xff]
    %v350 = vld [vmem:[#allocation7 + $0x170] sm:$0xff]
    %v351 = vld [vmem:[#allocation7 + $0x178] sm:$0xff]
    %v352 = vld [vmem:[#allocation7 + $0x180] sm:$0xff]
    %v353 = vld [vmem:[#allocation7 + $0x188] sm:$0xff]
    %v354 = vld [vmem:[#allocation7 + $0x190] sm:$0xff]
    %v355 = vld [vmem:[#allocation7 + $0x198] sm:$0xff]
    %v356 = vld [vmem:[#allocation7 + $0x1a0] sm:$0xff]
    %v357 = vld [vmem:[#allocation7 + $0x1a8] sm:$0xff]
    %v358 = vld [vmem:[#allocation7 + $0x1b0] sm:$0xff]
    %v359 = vld [vmem:[#allocation7 + $0x1b8] sm:$0xff]
    %v360 = vld [vmem:[#allocation7 + $0x1c0] sm:$0xff]
    %v361 = vld [vmem:[#allocation7 + $0x1c8] sm:$0xff]
    %v362 = vld [vmem:[#allocation7 + $0x1d0] sm:$0xff]
    %v363 = vld [vmem:[#allocation7 + $0x1d8] sm:$0xff]
    %v364 = vld [vmem:[#allocation7 + $0x1e0] sm:$0xff]
    %v365 = vld [vmem:[#allocation7 + $0x1e8] sm:$0xff]
    %v366 = vld [vmem:[#allocation7 + $0x1f0] sm:$0xff]
    %v367 = vld [vmem:[#allocation7 + $0x1f8] sm:$0xff]
    %v368 = vld [vmem:[#allocation8] sm:$0xff]
    %v369 = vld [vmem:[#allocation8 + $0x8] sm:$0xff]
    %v370 = vld [vmem:[#allocation8 + $0x10] sm:$0xff]
    %v371 = vld [vmem:[#allocation8 + $0x18] sm:$0xff]
    %v372 = vld [vmem:[#allocation8 + $0x20] sm:$0xff]
    %v373 = vld [vmem:[#allocation8 + $0x28] sm:$0xff]
    %v374 = vld [vmem:[#allocation8 + $0x30] sm:$0xff]
    %v375 = vld [vmem:[#allocation8 + $0x38] sm:$0xff]
    %v376 = vld [vmem:[#allocation8 + $0x40] sm:$0xff]
    %v377 = vld [vmem:[#allocation8 + $0x48] sm:$0xff]
    %v378 = vld [vmem:[#allocation8 + $0x50] sm:$0xff]
    %v379 = vld [vmem:[#allocation8 + $0x58] sm:$0xff]
    %v380 = vld [vmem:[#allocation8 + $0x60] sm:$0xff]
    %v381 = vld [vmem:[#allocation8 + $0x68] sm:$0xff]
    %v382 = vld [vmem:[#allocation8 + $0x70] sm:$0xff]
    %v383 = vld [vmem:[#allocation8 + $0x78] sm:$0xff]
    %v384 = vld [vmem:[#allocation8 + $0x80] sm:$0xff]
    %v385 = vld [vmem:[#allocation8 + $0x88] sm:$0xff]
    %v386 = vld [vmem:[#allocation8 + $0x90] sm:$0xff]
    %v387 = vld [vmem:[#allocation8 + $0x98] sm:$0xff]
    %v388 = vld [vmem:[#allocation8 + $0xa0] sm:$0xff]
    %v389 = vld [vmem:[#allocation8 + $0xa8] sm:$0xff]
    %v390 = vld [vmem:[#allocation8 + $0xb0] sm:$0xff]
    %v391 = vld [vmem:[#allocation8 + $0xb8] sm:$0xff]
    %v392 = vld [vmem:[#allocation8 + $0xc0] sm:$0xff]
    %v393 = vld [vmem:[#allocation8 + $0xc8] sm:$0xff]
    %v394 = vld [vmem:[#allocation8 + $0xd0] sm:$0xff]
    %v395 = vld [vmem:[#allocation8 + $0xd8] sm:$0xff]
    %v396 = vld [vmem:[#allocation8 + $0xe0] sm:$0xff]
    %v397 = vld [vmem:[#allocation8 + $0xe8] sm:$0xff]
    %v398 = vld [vmem:[#allocation8 + $0xf0] sm:$0xff]
    %v399 = vld [vmem:[#allocation8 + $0xf8] sm:$0xff]
    %v400 = vld [vmem:[#allocation8 + $0x100] sm:$0xff]
    %v401 = vld [vmem:[#allocation8 + $0x108] sm:$0xff]
    %v402 = vld [vmem:[#allocation8 + $0x110] sm:$0xff]
    %v403 = vld [vmem:[#allocation8 + $0x118] sm:$0xff]
    %v404 = vld [vmem:[#allocation8 + $0x120] sm:$0xff]
    %v405 = vld [vmem:[#allocation8 + $0x128] sm:$0xff]
    %v406 = vld [vmem:[#allocation8 + $0x130] sm:$0xff]
    %v407 = vld [vmem:[#allocation8 + $0x138] sm:$0xff]
    %v408 = vld [vmem:[#allocation8 + $0x140] sm:$0xff]
    %v409 = vld [vmem:[#allocation8 + $0x148] sm:$0xff]
    %v410 = vld [vmem:[#allocation8 + $0x150] sm:$0xff]
    %v411 = vld [vmem:[#allocation8 + $0x158] sm:$0xff]
    %v412 = vld [vmem:[#allocation8 + $0x160] sm:$0xff]
    %v413 = vld [vmem:[#allocation8 + $0x168] sm:$0xff]
    %v414 = vld [vmem:[#allocation8 + $0x170] sm:$0xff]
    %v415 = vld [vmem:[#allocation8 + $0x178] sm:$0xff]
    %v416 = vld [vmem:[#allocation8 + $0x180] sm:$0xff]
    %v417 = vld [vmem:[#allocation8 + $0x188] sm:$0xff]
    %v418 = vld [vmem:[#allocation8 + $0x190] sm:$0xff]
    %v419 = vld [vmem:[#allocation8 + $0x198] sm:$0xff]
    %v420 = vld [vmem:[#allocation8 + $0x1a0] sm:$0xff]
    %v421 = vld [vmem:[#allocation8 + $0x1a8] sm:$0xff]
    %v422 = vld [vmem:[#allocation8 + $0x1b0] sm:$0xff]
    %v423 = vld [vmem:[#allocation8 + $0x1b8] sm:$0xff]
    %v424 = vld [vmem:[#allocation8 + $0x1c0] sm:$0xff]
    %v425 = vld [vmem:[#allocation8 + $0x1c8] sm:$0xff]
    %v426 = vld [vmem:[#allocation8 + $0x1d0] sm:$0xff]
    %v427 = vld [vmem:[#allocation8 + $0x1d8] sm:$0xff]
    %v428 = vld [vmem:[#allocation8 + $0x1e0] sm:$0xff]
    %v429 = vld [vmem:[#allocation8 + $0x1e8] sm:$0xff]
    %v430 = vld [vmem:[#allocation8 + $0x1f0] sm:$0xff]
    %v431 = vld [vmem:[#allocation8 + $0x1f8] sm:$0xff]
    %432 = vmatprep.subr.mxu0 0.0
    %433 = vmatpush1.msra.mxu0 %v368
    %434 = vmatprep.subr.mxu0 0.0
    %435 = vmatpush1.msra.mxu0 %v369
    %436 = vmatprep.subr.mxu0 0.0
    %437 = vmatpush1.msra.mxu0 %v370
    %438 = vmatprep.subr.mxu0 0.0
    %439 = vmatpush1.msra.mxu0 %v371
    %440 = vmatprep.subr.mxu0 0.0
    %441 = vmatpush1.msra.mxu0 %v372
    %442 = vmatprep.subr.mxu0 0.0
    %443 = vmatpush1.msra.mxu0 %v373
    %444 = vmatprep.subr.mxu0 0.0
    %445 = vmatpush1.msra.mxu0 %v374
    %446 = vmatprep.subr.mxu0 0.0
    %447 = vmatpush1.msra.mxu0 %v375
    %448 = vmatprep.subr.mxu0 0.0
    %449 = vmatpush1.msra.mxu0 %v376
    %450 = vmatprep.subr.mxu0 0.0
    %451 = vmatpush1.msra.mxu0 %v377
    %452 = vmatprep.subr.mxu0 0.0
    %453 = vmatpush1.msra.mxu0 %v378
    %454 = vmatprep.subr.mxu0 0.0
    %455 = vmatpush1.msra.mxu0 %v379
    %456 = vmatprep.subr.mxu0 0.0
    %457 = vmatpush1.msra.mxu0 %v380
    %458 = vmatprep.subr.mxu0 0.0
    %459 = vmatpush1.msra.mxu0 %v381
    %460 = vmatprep.subr.mxu0 0.0
    %461 = vmatpush1.msra.mxu0 %v382
    %462 = vmatprep.subr.mxu0 0.0
    %463 = vmatpush1.msra.mxu0 %v383
    %464 = vmatprep.subr.mxu0 0.0
    %465 = vmatpush1.msra.mxu0 %v384
    %466 = vmatprep.subr.mxu0 0.0
    %467 = vmatpush1.msra.mxu0 %v385
    %468 = vmatprep.subr.mxu0 0.0
    %469 = vmatpush1.msra.mxu0 %v386
    %470 = vmatprep.subr.mxu0 0.0
    %471 = vmatpush1.msra.mxu0 %v387
    %472 = vmatprep.subr.mxu0 0.0
    %473 = vmatpush1.msra.mxu0 %v388
    %474 = vmatprep.subr.mxu0 0.0
    %475 = vmatpush1.msra.mxu0 %v389
    %476 = vmatprep.subr.mxu0 0.0
    %477 = vmatpush1.msra.mxu0 %v390
    %478 = vmatprep.subr.mxu0 0.0
    %479 = vmatpush1.msra.mxu0 %v391
    %480 = vmatprep.subr.mxu0 0.0
    %481 = vmatpush1.msra.mxu0 %v392
    %482 = vmatprep.subr.mxu0 0.0
    %483 = vmatpush1.msra.mxu0 %v393
    %484 = vmatprep.subr.mxu0 0.0
    %485 = vmatpush1.msra.mxu0 %v394
    %486 = vmatprep.subr.mxu0 0.0
    %487 = vmatpush1.msra.mxu0 %v395
    %488 = vmatprep.subr.mxu0 0.0
    %489 = vmatpush1.msra.mxu0 %v396
    %490 = vmatprep.subr.mxu0 0.0
    %491 = vmatpush1.msra.mxu0 %v397
    %492 = vmatprep.subr.mxu0 0.0
    %493 = vmatpush1.msra.mxu0 %v398
    %494 = vmatprep.subr.mxu0 0.0
    %495 = vmatpush1.msra.mxu0 %v399
    %496 = vmatprep.mubr.f32.mxu0 %v297
    %497 = vmatmul.mubr.f32.gmra.mrb[0].mxu0 %v296
    %v498 = vpop.f32.mrb[0].mxu0
    %v499 = vadd.f32 0.0, %v498
    %v500 = vpop.f32.mrb[0].mxu0
    %501 = vmatprep.mubr.f32.mxu0 %v301
    %502 = vmatmul.mubr.f32.gmra.mrb[0].mxu0 %v300
    %v503 = vpop.f32.mrb[0].mxu0
    %v504 = vadd.f32 0.0, %v503
    %v505 = vpop.f32.mrb[0].mxu0
    %506 = vdwg.mxu0
    %507 = vmatprep.subr.mxu0 0.0
    %508 = vmatpush1.msra.mxu0 %v400
    %509 = vmatprep.subr.mxu0 0.0
    %510 = vmatpush1.msra.mxu0 %v401
    %511 = vmatprep.subr.mxu0 0.0
    %512 = vmatpush1.msra.mxu0 %v402
    %513 = vmatprep.subr.mxu0 0.0
    %514 = vmatpush1.msra.mxu0 %v403
    %515 = vmatprep.subr.mxu0 0.0
    %516 = vmatpush1.msra.mxu0 %v404
    %517 = vmatprep.subr.mxu0 0.0
    %518 = vmatpush1.msra.mxu0 %v405
    %519 = vmatprep.subr.mxu0 0.0
    %520 = vmatpush1.msra.mxu0 %v406
    %521 = vmatprep.subr.mxu0 0.0
    %522 = vmatpush1.msra.mxu0 %v407
    %523 = vmatprep.subr.mxu0 0.0
    %524 = vmatpush1.msra.mxu0 %v408
    %525 = vmatprep.subr.mxu0 0.0
    %526 = vmatpush1.msra.mxu0 %v409
    %527 = vmatprep.subr.mxu0 0.0
    %528 = vmatpush1.msra.mxu0 %v410
    %529 = vmatprep.subr.mxu0 0.0
    %530 = vmatpush1.msra.mxu0 %v411
    %531 = vmatprep.subr.mxu0 0.0
    %532 = vmatpush1.msra.mxu0 %v412
    %533 = vmatprep.subr.mxu0 0.0
    %534 = vmatpush1.msra.mxu0 %v413
    %535 = vmatprep.subr.mxu0 0.0
    %536 = vmatpush1.msra.mxu0 %v414
    %537 = vmatprep.subr.mxu0 0.0
    %538 = vmatpush1.msra.mxu0 %v415
    %539 = vmatprep.subr.mxu0 0.0
    %540 = vmatpush1.msra.mxu0 %v416
    %541 = vmatprep.subr.mxu0 0.0
    %542 = vmatpush1.msra.mxu0 %v417
    %543 = vmatprep.subr.mxu0 0.0
    %544 = vmatpush1.msra.mxu0 %v418
    %545 = vmatprep.subr.mxu0 0.0
    %546 = vmatpush1.msra.mxu0 %v419
    %547 = vmatprep.subr.mxu0 0.0
    %548 = vmatpush1.msra.mxu0 %v420
    %549 = vmatprep.subr.mxu0 0.0
    %550 = vmatpush1.msra.mxu0 %v421
    %551 = vmatprep.subr.mxu0 0.0
    %552 = vmatpush1.msra.mxu0 %v422
    %553 = vmatprep.subr.mxu0 0.0
    %554 = vmatpush1.msra.mxu0 %v423
    %555 = vmatprep.subr.mxu0 0.0
    %556 = vmatpush1.msra.mxu0 %v424
    %557 = vmatprep.subr.mxu0 0.0
    %558 = vmatpush1.msra.mxu0 %v425
    %559 = vmatprep.subr.mxu0 0.0
    %560 = vmatpush1.msra.mxu0 %v426
    %561 = vmatprep.subr.mxu0 0.0
    %562 = vmatpush1.msra.mxu0 %v427
    %563 = vmatprep.subr.mxu0 0.0
    %564 = vmatpush1.msra.mxu0 %v428
    %565 = vmatprep.subr.mxu0 0.0
    %566 = vmatpush1.msra.mxu0 %v429
    %567 = vmatprep.subr.mxu0 0.0
    %568 = vmatpush1.msra.mxu0 %v430
    %569 = vmatprep.subr.mxu0 0.0
    %570 = vmatpush1.msra.mxu0 %v431
    %571 = vmatprep.mubr.f32.mxu0 %v299
    %572 = vmatmul.mubr.f32.gmra.mrb[0].mxu0 %v298
    %v573 = vpop.f32.mrb[0].mxu0
    %v574 = vadd.f32 %v499, %v573
    %v575 = vpop.f32.mrb[0].mxu0
    %576 = vmatprep.mubr.f32.mxu0 %v303
    %577 = vmatmul.mubr.f32.gmra.mrb[0].mxu0 %v302
    %v578 = vpop.f32.mrb[0].mxu0
    %v579 = vadd.f32 %v504, %v578
    %v580 = vpop.f32.mrb[0].mxu0
    %581 = vdwg.mxu0
    %582 = vmatprep.subr.mxu0 0.0
    %583 = vmatpush1.msra.mxu0 %v304
    %584 = vmatprep.subr.mxu0 0.0
    %585 = vmatpush1.msra.mxu0 %v305
    %586 = vmatprep.subr.mxu0 0.0
    %587 = vmatpush1.msra.mxu0 %v306
    %588 = vmatprep.subr.mxu0 0.0
    %589 = vmatpush1.msra.mxu0 %v307
    %590 = vmatprep.subr.mxu0 0.0
    %591 = vmatpush1.msra.mxu0 %v308
    %592 = vmatprep.subr.mxu0 0.0
    %593 = vmatpush1.msra.mxu0 %v309
    %594 = vmatprep.subr.mxu0 0.0
    %595 = vmatpush1.msra.mxu0 %v310
    %596 = vmatprep.subr.mxu0 0.0
    %597 = vmatpush1.msra.mxu0 %v311
    %598 = vmatprep.subr.mxu0 0.0
    %599 = vmatpush1.msra.mxu0 %v312
    %600 = vmatprep.subr.mxu0 0.0
    %601 = vmatpush1.msra.mxu0 %v313
    %602 = vmatprep.subr.mxu0 0.0
    %603 = vmatpush1.msra.mxu0 %v314
    %604 = vmatprep.subr.mxu0 0.0
    %605 = vmatpush1.msra.mxu0 %v315
    %606 = vmatprep.subr.mxu0 0.0
    %607 = vmatpush1.msra.mxu0 %v316
    %608 = vmatprep.subr.mxu0 0.0
    %609 = vmatpush1.msra.mxu0 %v317
    %610 = vmatprep.subr.mxu0 0.0
    %611 = vmatpush1.msra.mxu0 %v318
    %612 = vmatprep.subr.mxu0 0.0
    %613 = vmatpush1.msra.mxu0 %v319
    %614 = vmatprep.subr.mxu0 0.0
    %615 = vmatpush1.msra.mxu0 %v320
    %616 = vmatprep.subr.mxu0 0.0
    %617 = vmatpush1.msra.mxu0 %v321
    %618 = vmatprep.subr.mxu0 0.0
    %619 = vmatpush1.msra.mxu0 %v322
    %620 = vmatprep.subr.mxu0 0.0
    %621 = vmatpush1.msra.mxu0 %v323
    %622 = vmatprep.subr.mxu0 0.0
    %623 = vmatpush1.msra.mxu0 %v324
    %624 = vmatprep.subr.mxu0 0.0
    %625 = vmatpush1.msra.mxu0 %v325
    %626 = vmatprep.subr.mxu0 0.0
    %627 = vmatpush1.msra.mxu0 %v326
    %628 = vmatprep.subr.mxu0 0.0
    %629 = vmatpush1.msra.mxu0 %v327
    %630 = vmatprep.subr.mxu0 0.0
    %631 = vmatpush1.msra.mxu0 %v328
    %632 = vmatprep.subr.mxu0 0.0
    %633 = vmatpush1.msra.mxu0 %v329
    %634 = vmatprep.subr.mxu0 0.0
    %635 = vmatpush1.msra.mxu0 %v330
    %636 = vmatprep.subr.mxu0 0.0
    %637 = vmatpush1.msra.mxu0 %v331
    %638 = vmatprep.subr.mxu0 0.0
    %639 = vmatpush1.msra.mxu0 %v332
    %640 = vmatprep.subr.mxu0 0.0
    %641 = vmatpush1.msra.mxu0 %v333
    %642 = vmatprep.subr.mxu0 0.0
    %643 = vmatpush1.msra.mxu0 %v334
    %644 = vmatprep.subr.mxu0 0.0
    %645 = vmatpush1.msra.mxu0 %v335
    %646 = vmatprep.mubr.f32.mxu0 %v229
    %647 = vmatmul.mubr.f32.gmra.mrb[0].mxu0 %v228
    %v648 = vpop.f32.mrb[0].mxu0
    %v649 = vadd.f32 %v574, %v648
    %v650 = vpop.f32.mrb[0].mxu0
    %651 = vmatprep.mubr.f32.mxu0 %v233
    %652 = vmatmul.mubr.f32.gmra.mrb[0].mxu0 %v232
    %v653 = vpop.f32.mrb[0].mxu0
    %v654 = vadd.f32 %v579, %v653
    %v655 = vpop.f32.mrb[0].mxu0
    %656 = vdwg.mxu0
    %657 = vmatprep.subr.mxu0 0.0
    %658 = vmatpush1.msra.mxu0 %v336
    %659 = vmatprep.subr.mxu0 0.0
    %660 = vmatpush1.msra.mxu0 %v337
    %661 = vmatprep.subr.mxu0 0.0
    %662 = vmatpush1.msra.mxu0 %v338
    %663 = vmatprep.subr.mxu0 0.0
    %664 = vmatpush1.msra.mxu0 %v339
    %665 = vmatprep.subr.mxu0 0.0
    %666 = vmatpush1.msra.mxu0 %v340
    %667 = vmatprep.subr.mxu0 0.0
    %668 = vmatpush1.msra.mxu0 %v341
    %669 = vmatprep.subr.mxu0 0.0
    %670 = vmatpush1.msra.mxu0 %v342
    %671 = vmatprep.subr.mxu0 0.0
    %672 = vmatpush1.msra.mxu0 %v343
    %673 = vmatprep.subr.mxu0 0.0
    %674 = vmatpush1.msra.mxu0 %v344
    %675 = vmatprep.subr.mxu0 0.0
    %676 = vmatpush1.msra.mxu0 %v345
    %677 = vmatprep.subr.mxu0 0.0
    %678 = vmatpush1.msra.mxu0 %v346
    %679 = vmatprep.subr.mxu0 0.0
    %680 = vmatpush1.msra.mxu0 %v347
    %681 = vmatprep.subr.mxu0 0.0
    %682 = vmatpush1.msra.mxu0 %v348
    %683 = vmatprep.subr.mxu0 0.0
    %684 = vmatpush1.msra.mxu0 %v349
    %685 = vmatprep.subr.mxu0 0.0
    %686 = vmatpush1.msra.mxu0 %v350
    %687 = vmatprep.subr.mxu0 0.0
    %688 = vmatpush1.msra.mxu0 %v351
    %689 = vmatprep.subr.mxu0 0.0
    %690 = vmatpush1.msra.mxu0 %v352
    %691 = vmatprep.subr.mxu0 0.0
    %692 = vmatpush1.msra.mxu0 %v353
    %693 = vmatprep.subr.mxu0 0.0
    %694 = vmatpush1.msra.mxu0 %v354
    %695 = vmatprep.subr.mxu0 0.0
    %696 = vmatpush1.msra.mxu0 %v355
    %697 = vmatprep.subr.mxu0 0.0
    %698 = vmatpush1.msra.mxu0 %v356
    %699 = vmatprep.subr.mxu0 0.0
    %700 = vmatpush1.msra.mxu0 %v357
    %701 = vmatprep.subr.mxu0 0.0
    %702 = vmatpush1.msra.mxu0 %v358
    %703 = vmatprep.subr.mxu0 0.0
    %704 = vmatpush1.msra.mxu0 %v359
    %705 = vmatprep.subr.mxu0 0.0
    %706 = vmatpush1.msra.mxu0 %v360
    %707 = vmatprep.subr.mxu0 0.0
    %708 = vmatpush1.msra.mxu0 %v361
    %709 = vmatprep.subr.mxu0 0.0
    %710 = vmatpush1.msra.mxu0 %v362
    %711 = vmatprep.subr.mxu0 0.0
    %712 = vmatpush1.msra.mxu0 %v363
    %713 = vmatprep.subr.mxu0 0.0
    %714 = vmatpush1.msra.mxu0 %v364
    %715 = vmatprep.subr.mxu0 0.0
    %716 = vmatpush1.msra.mxu0 %v365
    %717 = vmatprep.subr.mxu0 0.0
    %718 = vmatpush1.msra.mxu0 %v366
    %719 = vmatprep.subr.mxu0 0.0
    %720 = vmatpush1.msra.mxu0 %v367
    %721 = vmatprep.mubr.f32.mxu0 %v231
    %722 = vmatmul.mubr.f32.gmra.mrb[0].mxu0 %v230
    %v723 = vpop.f32.mrb[0].mxu0
    %v724 = vadd.f32 %v649, %v723
    %v725 = vpop.f32.mrb[0].mxu0
    %726 = vmatprep.mubr.f32.mxu0 %v235
    %727 = vmatmul.mubr.f32.gmra.mrb[0].mxu0 %v234
    %v728 = vpop.f32.mrb[0].mxu0
    %v729 = vadd.f32 %v654, %v728
    %v730 = vpop.f32.mrb[0].mxu0
    %731 = vdwg.mxu0
    %v732 = vld [vmem:[%s6] sm:$0x1]
    %v734 = vlaneseq
    %v735 = vshrl.u32 %v734, 7
    %v736 = vsub.s32 0, %v735
    %v737 = vrot.slane %v732, %v736
    %v739 = vadd.f32 %v724, %v737
    %v740 = vadd.f32 %v729, %v737
    %v741 = vmul.f32 %v739, 0.5
    %v742 = vmul.f32 %v740, 0.5
    %v743 = vmul.f32 %v739, 0.70710677
    %v744 = vmul.f32 %v740, 0.70710677
    %vm745 = vcmp.lt.f32.partialorder %v743, 0.0
    %vm746 = vcmp.lt.f32.partialorder %v744, 0.0
    %v747 = vsel %vm745, -1.0, 1.0
    %v748 = vsel %vm746, -1.0, 1.0
    %v749 = vand.u32 2147483647, %v743
    %v750 = vand.u32 2147483647, %v744
    %v751 = vmul.f32 %v749, 0.3275911
    %v752 = vmul.f32 %v750, 0.3275911
    %v753 = vadd.f32 %v751, 1.0
    %v754 = vadd.f32 %v752, 1.0
    %v755 = vrcp.pop %v753
    %v756 = vmul.f32 1.0, %v755
    %v757 = vrcp.pop %v754
    %v758 = vmul.f32 1.0, %v757
    %v759 = vmul.f32 %v756, 1.0614054
    %v760 = vmul.f32 %v758, 1.0614054
    %v761 = vadd.f32 %v759, -1.4531521
    %v762 = vadd.f32 %v760, -1.4531521
    %v763 = vmul.f32 %v761, %v756
    %v764 = vmul.f32 %v762, %v758
    %v765 = vadd.f32 %v763, 1.4214138
    %v766 = vadd.f32 %v764, 1.4214138
    %v767 = vmul.f32 %v765, %v756
    %v768 = vmul.f32 %v766, %v758
    %v769 = vadd.f32 %v767, -0.28449672
    %v770 = vadd.f32 %v768, -0.28449672
    %v771 = vmul.f32 %v769, %v756
    %v772 = vmul.f32 %v770, %v758
    %v773 = vadd.f32 %v771, 0.2548296
    %v774 = vadd.f32 %v772, 0.2548296
    %v775 = vmul.f32 %v773, %v756
    %v776 = vmul.f32 %v774, %v758
    %v777 = vsub.f32 0.0, %v749
    %v778 = vsub.f32 0.0, %v750
    %v779 = vmul.f32 %v777, %v749
    %v780 = vmul.f32 %v778, %v750
    %v781 = vmul.f32 %v779, 1.442695
    %v782 = vpow.pop %v781
    %v783 = vmul.f32 %v780, 1.442695
    %v784 = vpow.pop %v783
    %v785 = vmul.f32 %v775, %v782
    %v786 = vmul.f32 %v776, %v784
    %v787 = vsub.f32 1.0, %v785
    %v788 = vsub.f32 1.0, %v786
    %v789 = vmul.f32 %v747, %v787
    %v790 = vmul.f32 %v748, %v788
    %v791 = vadd.f32 %v789, 1.0
    %v792 = vadd.f32 %v790, 1.0
    %v793 = vmul.f32 %v741, %v791
    %v794 = vmul.f32 %v742, %v792
    %v795 = vld [vmem:[%s7] sm:$0x1]
    %v796 = vld [vmem:[%s8] sm:$0x1]
    %797 = vadd.xlane.f32.xlu0 %v793
    %v798 = vpop.xlane.xlu0 %797
    %799 = vadd.xlane.f32.xlu0 %v794
    %v800 = vpop.xlane.xlu0 %799
    %v801 = vrcp.pop 128.0
    %v802 = vmul.f32 %v798, %v801
    %v803 = vmul.f32 %v800, %v801
    %v804 = vsub.f32 %v793, %v802
    %v805 = vsub.f32 %v794, %v803
    %v806 = vmul.f32 %v804, %v804
    %v807 = vmul.f32 %v805, %v805
    %808 = vadd.xlane.f32.xlu0 %v806
    %v809 = vpop.xlane.xlu0 %808
    %810 = vadd.xlane.f32.xlu0 %v807
    %v811 = vpop.xlane.xlu0 %810
    %v812 = vmul.f32 %v809, %v801
    %v813 = vmul.f32 %v811, %v801
    %v814 = vadd.f32 %v812, 1e-12
    %v815 = vadd.f32 %v813, 1e-12
    %v816 = vrsqrt.pop %v814
    %v817 = vrsqrt.pop %v815
    %v818 = vmul.f32 %v804, %v816
    %v819 = vmul.f32 %v805, %v817
    %v821 = vlaneseq
    %v822 = vshrl.u32 %v821, 7
    %v823 = vsub.s32 0, %v822
    %v824 = vrot.slane %v795, %v823
    %v826 = vmul.f32 %v818, %v824
    %v827 = vmul.f32 %v819, %v824
    %v829 = vlaneseq
    %v830 = vshrl.u32 %v829, 7
    %v831 = vsub.s32 0, %v830
    %v832 = vrot.slane %v796, %v831
    %v834 = vadd.f32 %v826, %v832
    %v835 = vadd.f32 %v827, %v832
    %v836 = vld [vmem:[#allocation10] sm:$0xff]
    %v837 = vld [vmem:[#allocation10 + $0x8] sm:$0xff]
    %v838 = vld [vmem:[#allocation10 + $0x10] sm:$0xff]
    %v839 = vld [vmem:[#allocation10 + $0x18] sm:$0xff]
    %v840 = vld [vmem:[#allocation10 + $0x20] sm:$0xff]
    %v841 = vld [vmem:[#allocation10 + $0x28] sm:$0xff]
    %v842 = vld [vmem:[#allocation10 + $0x30] sm:$0xff]
    %v843 = vld [vmem:[#allocation10 + $0x38] sm:$0xff]
    %v844 = vld [vmem:[#allocation10 + $0x40] sm:$0xff]
    %v845 = vld [vmem:[#allocation10 + $0x48] sm:$0xff]
    %v846 = vld [vmem:[#allocation10 + $0x50] sm:$0xff]
    %v847 = vld [vmem:[#allocation10 + $0x58] sm:$0xff]
    %v848 = vld [vmem:[#allocation10 + $0x60] sm:$0xff]
    %v849 = vld [vmem:[#allocation10 + $0x68] sm:$0xff]
    %v850 = vld [vmem:[#allocation10 + $0x70] sm:$0xff]
    %v851 = vld [vmem:[#allocation10 + $0x78] sm:$0xff]
    %v852 = vld [vmem:[%s10] sm:$0x1]
    %v854 = vlaneseq
    %v855 = vshrl.u32 %v854, 7
    %v856 = vsub.s32 0, %v855
    %v857 = vrot.slane %v852, %v856
    %859 = vmatprep.subr.mxu0 0.0
    %860 = vmatpush1.msra.mxu0 %v836
    %861 = vmatprep.subr.mxu0 0.0
    %862 = vmatpush1.msra.mxu0 %v837
    %863 = vmatprep.subr.mxu0 0.0
    %864 = vmatpush1.msra.mxu0 %v838
    %865 = vmatprep.subr.mxu0 0.0
    %866 = vmatpush1.msra.mxu0 %v839
    %867 = vmatprep.subr.mxu0 0.0
    %868 = vmatpush1.msra.mxu0 %v840
    %869 = vmatprep.subr.mxu0 0.0
    %870 = vmatpush1.msra.mxu0 %v841
    %871 = vmatprep.subr.mxu0 0.0
    %872 = vmatpush1.msra.mxu0 %v842
    %873 = vmatprep.subr.mxu0 0.0
    %874 = vmatpush1.msra.mxu0 %v843
    %875 = vmatprep.subr.mxu0 0.0
    %876 = vmatpush1.msra.mxu0 %v844
    %877 = vmatprep.subr.mxu0 0.0
    %878 = vmatpush1.msra.mxu0 %v845
    %879 = vmatprep.subr.mxu0 0.0
    %880 = vmatpush1.msra.mxu0 %v846
    %881 = vmatprep.subr.mxu0 0.0
    %882 = vmatpush1.msra.mxu0 %v847
    %883 = vmatprep.subr.mxu0 0.0
    %884 = vmatpush1.msra.mxu0 %v848
    %885 = vmatprep.subr.mxu0 0.0
    %886 = vmatpush1.msra.mxu0 %v849
    %887 = vmatprep.subr.mxu0 0.0
    %888 = vmatpush1.msra.mxu0 %v850
    %889 = vmatprep.subr.mxu0 0.0
    %890 = vmatpush1.msra.mxu0 %v851
    %891 = vmatprep.subr.mxu0 0.0
    %892 = vmatpush1.msra.mxu0 0.0
    %893 = vmatprep.subr.mxu0 0.0
    %894 = vmatpush1.msra.mxu0 0.0
    %895 = vmatprep.subr.mxu0 0.0
    %896 = vmatpush1.msra.mxu0 0.0
    %897 = vmatprep.subr.mxu0 0.0
    %898 = vmatpush1.msra.mxu0 0.0
    %899 = vmatprep.subr.mxu0 0.0
    %900 = vmatpush1.msra.mxu0 0.0
    %901 = vmatprep.subr.mxu0 0.0
    %902 = vmatpush1.msra.mxu0 0.0
    %903 = vmatprep.subr.mxu0 0.0
    %904 = vmatpush1.msra.mxu0 0.0
    %905 = vmatprep.subr.mxu0 0.0
    %906 = vmatpush1.msra.mxu0 0.0
    %907 = vmatprep.subr.mxu0 0.0
    %908 = vmatpush1.msra.mxu0 0.0
    %909 = vmatprep.subr.mxu0 0.0
    %910 = vmatpush1.msra.mxu0 0.0
    %911 = vmatprep.subr.mxu0 0.0
    %912 = vmatpush1.msra.mxu0 0.0
    %913 = vmatprep.subr.mxu0 0.0
    %914 = vmatpush1.msra.mxu0 0.0
    %915 = vmatprep.subr.mxu0 0.0
    %916 = vmatpush1.msra.mxu0 0.0
    %917 = vmatprep.subr.mxu0 0.0
    %918 = vmatpush1.msra.mxu0 0.0
    %919 = vmatprep.subr.mxu0 0.0
    %920 = vmatpush1.msra.mxu0 0.0
    %921 = vmatprep.subr.mxu0 0.0
    %922 = vmatpush1.msra.mxu0 0.0
    %923 = vmatprep.mubr.f32.mxu0 0.0
    %924 = vmatmul.mubr.f32.gmra.mrb[0].mxu0 %v834
    %v925 = vpop.f32.mrb[0].mxu0
    %v926 = vadd.f32 %v857, %v925
    %v927 = vpop.f32.mrb[0].mxu0
    %928 = vmatprep.mubr.f32.mxu0 0.0
    %929 = vmatmul.mubr.f32.gmra.mrb[0].mxu0 %v835
    %v930 = vpop.f32.mrb[0].mxu0
    %v931 = vadd.f32 %v857, %v930
    %v932 = vpop.f32.mrb[0].mxu0
    %933 = vdwg.mxu0
    %934 = vst [vmem:[#allocation11] sm:$0xff] %v926
    %935 = vst [vmem:[#allocation11 + $0x8] sm:$0xff] %v931
    // Predicated region
    $region66: #{tpu_custom_call.1} parent=1 // pred_check
      _
    $region67: #{tpu_custom_call.1} parent=1 // pred_check_branch
      %937 = sbr.rel (0) target = $region69
    $region68: #{tpu_custom_call.1} parent=1 // pred_region
      %s939 = ssub.s32 256, 256
      %940 = vsyncadd [#allocation4], %s939
      %s941 = sshll.u32 [#allocation11], 4
      %s942 = int_to_ptr.vmem [resolvable:$true] %s941
      %947 = dma.vmem_to_hbm [thread:$0]  %s942, 256, %s11, [#allocation4], 128, 128, 8
    $region69: #{tpu_custom_call.1} parent=1 // pred_fallthru
      _
    // Predicated region
    $region70: #{tpu_custom_call.1} parent=1 // pred_check
      _
    $region71: #{tpu_custom_call.1} parent=1 // pred_check_branch
      %949 = sbr.rel (0) target = $region73
    $region72: #{tpu_custom_call.1} parent=1 // pred_region
      %950 = dma.done [#allocation4], 256
    $region73: #{tpu_custom_call.1} parent=1 // pred_fallthru
      _
    %951 = vsyncpa [#allocation3], 1
    %952 = vsyncpa [#allocation6], 1
    %953 = vsyncpa [#allocation9], 1
    %954 = vsyncpa [#allocation4], 1

</llo_original>
